<compile_context>
chip_gen: v5e
topology: v5e:2x2
jax: 0.10.0
libtpu: 0.0.40
codegen_flags: <defaults>
</compile_context>

<pallas_src>
import jax
import jax.numpy as jnp
from jax.experimental import pallas as pl
from jax.experimental.pallas import tpu as pltpu

STATE_DIM = 3
REWARD_DIM = 1
LATENT_DIM = 8
HIDDEN_DIM = 32
TIMESTEPS = 10
BATCH = 2
BETA = 0.5
LANES = 128

TAU_DIM = (STATE_DIM + REWARD_DIM) * TIMESTEPS   # 40
S_DIM = STATE_DIM * TIMESTEPS                    # 30
R_DIM = REWARD_DIM * TIMESTEPS                   # 10

# ----------------------------------------------------------------------------
# Weight-slab layout (all offsets static Python ints, captured by the kernel).
# Each weight matrix is stored transposed as [in_features, out_features] and
# placed at an 8-aligned sublane offset inside a single [SLAB_ROWS, 128] f32
# slab (lane-padded so the HBM->VMEM DMA is one unmasked block copy).
# Weights that multiply concatenated inputs (enc_p_1 / enc_znext_1 / dec1)
# keep their natural row split so the kernel does partial matmuls instead of
# concatenating activations.
# ----------------------------------------------------------------------------
WEIGHT_SPECS = [          # (name, rows = in_features, cols = out_features)
    ("zc1", TAU_DIM, HIDDEN_DIM),
    ("zc2", HIDDEN_DIM, HIDDEN_DIM),
    ("zc3", HIDDEN_DIM, LATENT_DIM),
    ("p1", LATENT_DIM * 4, HIDDEN_DIM),
    ("p2", HIDDEN_DIM, HIDDEN_DIM),
    ("pm", HIDDEN_DIM, LATENT_DIM),
    ("pv", HIDDEN_DIM, LATENT_DIM),
    ("zn1", LATENT_DIM * 2, HIDDEN_DIM),
    ("zn2", HIDDEN_DIM, HIDDEN_DIM),
    ("znm", HIDDEN_DIM, LATENT_DIM),
    ("znv", HIDDEN_DIM, LATENT_DIM),
    ("d1s", S_DIM, HIDDEN_DIM),          # dec1 rows that multiply the states
    ("d1z", LATENT_DIM, HIDDEN_DIM),     # dec1 rows that multiply the latent
    ("d2", HIDDEN_DIM, HIDDEN_DIM),
    ("d3", HIDDEN_DIM, R_DIM),
]
BIAS_SPECS = [            # (name, cols) -- one slab row each
    ("zc1", HIDDEN_DIM), ("zc2", HIDDEN_DIM), ("zc3", LATENT_DIM),
    ("p1", HIDDEN_DIM), ("p2", HIDDEN_DIM), ("pm", LATENT_DIM), ("pv", LATENT_DIM),
    ("zn1", HIDDEN_DIM), ("zn2", HIDDEN_DIM), ("znm", LATENT_DIM), ("znv", LATENT_DIM),
    ("d1", HIDDEN_DIM), ("d2", HIDDEN_DIM), ("d3", R_DIM),
]


def _round8(n):
    return -(-n // 8) * 8


def _build_layout():
    off = 0
    w_off = {}
    for name, r, _ in WEIGHT_SPECS:
        w_off[name] = off
        off += _round8(r)
    bias_off = off
    total = bias_off + _round8(len(BIAS_SPECS))
    return w_off, bias_off, total


W_OFF, BIAS_OFF, SLAB_ROWS = _build_layout()
W_DIMS = {name: (r, c) for name, r, c in WEIGHT_SPECS}
B_ROW = {name: i for i, (name, _) in enumerate(BIAS_SPECS)}
B_COLS = dict(BIAS_SPECS)


# ----------------------------------------------------------------------------
# Pallas kernel: entire forward pass fused.  5 VMEM inputs, 4 scalars to SMEM.
# ----------------------------------------------------------------------------
def rili_kernel(tau_ref, s_ref, rw_ref, noise_ref, w_ref, out_ref):
    def W(name):
        r, c = W_DIMS[name]
        off = W_OFF[name]
        return w_ref[off:off + r, 0:c]

    def Wrows(name, lo, hi):
        c = W_DIMS[name][1]
        off = W_OFF[name]
        return w_ref[off + lo:off + hi, 0:c]

    def B(name):
        row = BIAS_OFF + B_ROW[name]
        return w_ref[row:row + 1, 0:B_COLS[name]]

    def mm(x, w):
        return jnp.dot(x, w, preferred_element_type=jnp.float32)

    Bz = BATCH
    L = LATENT_DIM

    tau = tau_ref[...]      # [4B, 40]   rows: tau1|tau2|tau3|tau4
    s16 = s_ref[...]        # [8B, 30]   rows: s1..s4 | s2..s5
    rw16 = rw_ref[...]      # [8B, 10]   rows: r1..r4 | r2..r5
    noise = noise_ref[...]  # [5B, 8]    rows: n_p | n_z2..n_z5

    # ---- encoder_strategy: all 4 taus in one stacked 3-layer pass ----------
    x = jnp.tanh(mm(tau, W("zc1")) + B("zc1"))
    x = jnp.tanh(mm(x, W("zc2")) + B("zc2"))
    z = mm(x, W("zc3")) + B("zc3")                         # [4B, 8] = z1..z4

    # ---- encoder_partner: cat(z1..z4) as a sum of 4 partial matmuls --------
    h = (mm(z[0 * Bz:1 * Bz], Wrows("p1", 0 * L, 1 * L))
         + mm(z[1 * Bz:2 * Bz], Wrows("p1", 1 * L, 2 * L))
         + mm(z[2 * Bz:3 * Bz], Wrows("p1", 2 * L, 3 * L))
         + mm(z[3 * Bz:4 * Bz], Wrows("p1", 3 * L, 4 * L))
         + B("p1"))
    x = jnp.tanh(h)
    x = jnp.tanh(mm(x, W("p2")) + B("p2"))
    p_m = mm(x, W("pm")) + B("pm")                         # [B, 8]
    p_lv = mm(x, W("pv")) + B("pv")                        # [B, 8] (log-var)
    p = p_m + jnp.exp(0.5 * p_lv) * noise[0:Bz]            # [B, 8]

    # ---- dynamics: all 4 (z_i, p) pairs in one stacked pass -----------------
    pc = mm(p, Wrows("zn1", L, 2 * L)) + B("zn1")          # [B, 32]
    pc4 = jnp.concatenate([pc, pc, pc, pc], axis=0)        # [4B, 32]
    x = jnp.tanh(mm(z, Wrows("zn1", 0, L)) + pc4)
    x = jnp.tanh(mm(x, W("zn2")) + B("zn2"))
    zh_m = mm(x, W("znm")) + B("znm")                      # [4B, 8]
    zh_lv = mm(x, W("znv")) + B("znv")                     # [4B, 8] (log-var)
    zh = zh_m + jnp.exp(0.5 * zh_lv) * noise[Bz:5 * Bz]    # [4B, 8] = z2hat..z5hat

    # ---- decoder: all 8 contexts (4 curr + 4 next) in one stacked pass -----
    z16 = jnp.concatenate([z, zh], axis=0)                 # [8B, 8]
    x = jnp.tanh(mm(s16, W("d1s")) + mm(z16, W("d1z")) + B("d1"))
    x = jnp.tanh(mm(x, W("d2")) + B("d2"))
    r = (mm(x, W("d3")) + B("d3") - 1.0) * 100.0           # [8B, 10]

    # ---- fused losses (3 reductions instead of 13) --------------------------
    sq = (r - rw16) ** 2
    mse_den = float(Bz * R_DIM)          # each MSE is a mean over B*10 elems
    curr_loss = jnp.sum(sq[0:4 * Bz]) / mse_den
    next_loss = jnp.sum(sq[4 * Bz:8 * Bz]) / mse_den

    m10 = jnp.concatenate([zh_m, p_m], axis=0)             # [5B, 8]
    lv10 = jnp.concatenate([zh_lv, p_lv], axis=0)          # [5B, 8]
    kl_den = float(Bz * LATENT_DIM)      # each KL is a mean over B*8 elems
    kl_loss = -0.5 * jnp.sum(1.0 + lv10 - m10 * m10 - jnp.exp(lv10)) / kl_den

    total = curr_loss + next_loss + BETA * kl_loss
    out_ref[0] = total
    out_ref[1] = curr_loss
    out_ref[2] = next_loss
    out_ref[3] = kl_loss


def rili_forward_pallas(w_slab, tau_stack, s_stack, rw_stack, noise_stack):
    cost = pl.CostEstimate(flops=170_000, transcendentals=2_500,
                           bytes_accessed=260_000)
    return pl.pallas_call(
        rili_kernel,
        out_shape=jax.ShapeDtypeStruct((4,), jnp.float32),
        in_specs=[pl.BlockSpec(memory_space=pltpu.MemorySpace.VMEM)] * 5,
        out_specs=pl.BlockSpec(memory_space=pltpu.MemorySpace.SMEM),
        cost_estimate=cost,
    )(tau_stack, s_stack, rw_stack, noise_stack, w_slab)


# ----------------------------------------------------------------------------
# Parameter init (mirrors xavier_uniform_ / zero bias) and slab packing
# ----------------------------------------------------------------------------
def xavier_uniform(key, fan_in, fan_out):
    a = float(jnp.sqrt(6.0 / (fan_in + fan_out)))
    return jax.random.uniform(key, (fan_in, fan_out), jnp.float32, -a, a)


LAYER_DIMS = {
    "enc_zcurr_1": (TAU_DIM, HIDDEN_DIM),
    "enc_zcurr_2": (HIDDEN_DIM, HIDDEN_DIM),
    "enc_zcurr_3": (HIDDEN_DIM, LATENT_DIM),
    "enc_p_1": (LATENT_DIM * 4, HIDDEN_DIM),
    "enc_p_2": (HIDDEN_DIM, HIDDEN_DIM),
    "enc_p_mean": (HIDDEN_DIM, LATENT_DIM),
    "enc_p_log_var": (HIDDEN_DIM, LATENT_DIM),
    "enc_znext_1": (LATENT_DIM * 2, HIDDEN_DIM),
    "enc_znext_2": (HIDDEN_DIM, HIDDEN_DIM),
    "enc_znext_mean": (HIDDEN_DIM, LATENT_DIM),
    "enc_znext_log_var": (HIDDEN_DIM, LATENT_DIM),
    "dec1": (S_DIM + LATENT_DIM, HIDDEN_DIM),
    "dec2": (HIDDEN_DIM, HIDDEN_DIM),
    "dec3": (HIDDEN_DIM, R_DIM),
}


def init_params(key):
    params = {}
    keys = jax.random.split(key, len(LAYER_DIMS))
    for k, (name, (fi, fo)) in zip(keys, LAYER_DIMS.items()):
        params[name + "_w"] = xavier_uniform(k, fi, fo)
        params[name + "_b"] = jnp.zeros((1, fo), jnp.float32)
    return params


def pack_weights(p):
    mats = {
        "zc1": p["enc_zcurr_1_w"], "zc2": p["enc_zcurr_2_w"], "zc3": p["enc_zcurr_3_w"],
        "p1": p["enc_p_1_w"], "p2": p["enc_p_2_w"],
        "pm": p["enc_p_mean_w"], "pv": p["enc_p_log_var_w"],
        "zn1": p["enc_znext_1_w"], "zn2": p["enc_znext_2_w"],
        "znm": p["enc_znext_mean_w"], "znv": p["enc_znext_log_var_w"],
        "d1s": p["dec1_w"][:S_DIM], "d1z": p["dec1_w"][S_DIM:],
        "d2": p["dec2_w"], "d3": p["dec3_w"],
    }
    biases = {
        "zc1": p["enc_zcurr_1_b"], "zc2": p["enc_zcurr_2_b"], "zc3": p["enc_zcurr_3_b"],
        "p1": p["enc_p_1_b"], "p2": p["enc_p_2_b"],
        "pm": p["enc_p_mean_b"], "pv": p["enc_p_log_var_b"],
        "zn1": p["enc_znext_1_b"], "zn2": p["enc_znext_2_b"],
        "znm": p["enc_znext_mean_b"], "znv": p["enc_znext_log_var_b"],
        "d1": p["dec1_b"], "d2": p["dec2_b"], "d3": p["dec3_b"],
    }
    slab = jnp.zeros((SLAB_ROWS, LANES), jnp.float32)
    for name, r, c in WEIGHT_SPECS:
        slab = slab.at[W_OFF[name]:W_OFF[name] + r, :c].set(mats[name])
    for name, c in BIAS_SPECS:
        slab = slab.at[BIAS_OFF + B_ROW[name], :c].set(biases[name][0])
    return slab


# ----------------------------------------------------------------------------
# Pure-JAX reference (mirrors the PyTorch forward exactly, same noise)
# ----------------------------------------------------------------------------
def rili_forward_ref(p, taus, s_flat, rewards, noises):
    def lin(x, name):
        return x @ p[name + "_w"] + p[name + "_b"]

    def enc_strategy(t):
        x = jnp.tanh(lin(t, "enc_zcurr_1"))
        x = jnp.tanh(lin(x, "enc_zcurr_2"))
        return lin(x, "enc_zcurr_3")

    def enc_partner(z1, z2, z3, z4, noise):
        ctx = jnp.concatenate((z1, z2, z3, z4), -1)
        x = jnp.tanh(lin(ctx, "enc_p_1"))
        x = jnp.tanh(lin(x, "enc_p_2"))
        m = lin(x, "enc_p_mean")
        s = jnp.exp(0.5 * lin(x, "enc_p_log_var"))
        return m + s * noise, m, s

    def dynamics(z, pp, noise):
        ctx = jnp.concatenate((z, pp), -1)
        x = jnp.tanh(lin(ctx, "enc_znext_1"))
        x = jnp.tanh(lin(x, "enc_znext_2"))
        m = lin(x, "enc_znext_mean")
        s = jnp.exp(0.5 * lin(x, "enc_znext_log_var"))
        return m + s * noise, m, s

    def decoder(ctx):
        x = jnp.tanh(lin(ctx, "dec1"))
        x = jnp.tanh(lin(x, "dec2"))
        return (lin(x, "dec3") - 1.0) * 100.0

    def mse(a, b):
        return jnp.mean((a - b) ** 2)

    def kl(m, s):
        return -0.5 * jnp.mean(1.0 + jnp.log(s ** 2) - m ** 2 - s ** 2)

    tau1, tau2, tau3, tau4 = taus
    s1, s2, s3, s4, s5 = s_flat
    rw1, rw2, rw3, rw4, rw5 = rewards
    n_p, n2, n3, n4, n5 = noises

    z1, z2, z3, z4 = (enc_strategy(t) for t in (tau1, tau2, tau3, tau4))
    pp, p_m, p_s = enc_partner(z1, z2, z3, z4, n_p)
    z2h, z2m, z2s = dynamics(z1, pp, n2)
    z3h, z3m, z3s = dynamics(z2, pp, n3)
    z4h, z4m, z4s = dynamics(z3, pp, n4)
    z5h, z5m, z5s = dynamics(z4, pp, n5)

    r1str = decoder(jnp.concatenate((s1, z1), 1))
    r2str = decoder(jnp.concatenate((s2, z2), 1))
    r3str = decoder(jnp.concatenate((s3, z3), 1))
    r4str = decoder(jnp.concatenate((s4, z4), 1))
    r2hat = decoder(jnp.concatenate((s2, z2h), 1))
    r3hat = decoder(jnp.concatenate((s3, z3h), 1))
    r4hat = decoder(jnp.concatenate((s4, z4h), 1))
    r5hat = decoder(jnp.concatenate((s5, z5h), 1))

    curr = mse(r1str, rw1) + mse(r2str, rw2) + mse(r3str, rw3) + mse(r4str, rw4)
    nxt = mse(r2hat, rw2) + mse(r3hat, rw3) + mse(r4hat, rw4) + mse(r5hat, rw5)
    klv = kl(z2m, z2s) + kl(z3m, z3s) + kl(z4m, z4s) + kl(z5m, z5s) + kl(p_m, p_s)
    total = curr + nxt + BETA * klv
    return jnp.stack([total, curr, nxt, klv])


# ----------------------------------------------------------------------------
if __name__ == "__main__":
    key = jax.random.PRNGKey(0)
    kp, kd = jax.random.split(key)
    params = init_params(kp)

    dkeys = jax.random.split(kd, 19)
    taus = [jax.random.normal(dkeys[i], (BATCH, TAU_DIM), jnp.float32)
            for i in range(4)]
    states = [jax.random.normal(dkeys[4 + i], (BATCH, TIMESTEPS, STATE_DIM),
                                jnp.float32) for i in range(5)]
    rewards = [jax.random.normal(dkeys[9 + i], (BATCH, R_DIM), jnp.float32)
               for i in range(5)]
    noises = [jax.random.normal(dkeys[14 + i], (BATCH, LATENT_DIM), jnp.float32)
              for i in range(5)]

    s_flat = [s.reshape(BATCH, -1) for s in states]   # torch.flatten(states, 1)

    # ---- pack data into 4 stacked arrays + 1 weight slab (5 DMAs total) ----
    tau_stack = jnp.concatenate(taus, axis=0)                        # [4B, 40]
    s_stack = jnp.concatenate([s_flat[0], s_flat[1], s_flat[2], s_flat[3],
                               s_flat[1], s_flat[2], s_flat[3], s_flat[4]], 0)
    rw_stack = jnp.concatenate([rewards[0], rewards[1], rewards[2], rewards[3],
                                rewards[1], rewards[2], rewards[3], rewards[4]], 0)
    noise_stack = jnp.concatenate(noises, axis=0)                    # [5B, 8]
    w_slab = pack_weights(params)                                    # [SLAB_ROWS, 128]

    out = jax.block_until_ready(
        rili_forward_pallas(w_slab, tau_stack, s_stack, rw_stack, noise_stack))

    ref = rili_forward_ref(params, taus, s_flat, rewards, noises)
    assert out.shape == (4,) and bool(jnp.all(jnp.isfinite(out)))
    assert bool(jnp.allclose(out, ref, rtol=1e-2, atol=1e-2)), (out, ref)

    print("KERNEL_OK")
</pallas_src>

<mosaic_0001>
module attributes {stable_mosaic.version = 11 : i64} {
  func.func @rili_kernel(%arg0: memref<8x40xf32, #tpu.memory_space<vmem>>, %arg1: memref<16x30xf32, #tpu.memory_space<vmem>>, %arg2: memref<16x10xf32, #tpu.memory_space<vmem>>, %arg3: memref<10x8xf32, #tpu.memory_space<vmem>>, %arg4: memref<464x128xf32, #tpu.memory_space<vmem>>, %arg5: memref<4xf32, #tpu.memory_space<smem>>) attributes {dimension_semantics = [], scalar_prefetch = 0 : i64, scratch_operands = 0 : i64, tpu.core_type = #tpu.core_type<tc>} {
    %c0 = arith.constant 0 : index
    %c0_0 = arith.constant 0 : index
    %0 = vector.load %arg0[%c0, %c0_0] : memref<8x40xf32, #tpu.memory_space<vmem>>, vector<8x40xf32>
    %c0_1 = arith.constant 0 : index
    %c0_2 = arith.constant 0 : index
    %1 = vector.load %arg1[%c0_1, %c0_2] : memref<16x30xf32, #tpu.memory_space<vmem>>, vector<16x30xf32>
    %c0_3 = arith.constant 0 : index
    %c0_4 = arith.constant 0 : index
    %2 = vector.load %arg2[%c0_3, %c0_4] : memref<16x10xf32, #tpu.memory_space<vmem>>, vector<16x10xf32>
    %c0_5 = arith.constant 0 : index
    %c0_6 = arith.constant 0 : index
    %3 = vector.load %arg3[%c0_5, %c0_6] : memref<10x8xf32, #tpu.memory_space<vmem>>, vector<10x8xf32>
    %c0_7 = arith.constant 0 : index
    %c0_8 = arith.constant 0 : index
    %4 = vector.load %arg4[%c0_7, %c0_8] : memref<464x128xf32, #tpu.memory_space<vmem>>, vector<40x32xf32>
    %cst = arith.constant dense<0.000000e+00> : vector<8x32xf32>
    %5 = tpu.matmul %0, %4, %cst {dimension_numbers = #tpu.dot_dimension_numbers<[1], [0], [0], [1], [0, 0, 1, 1], [], []>} : vector<8x40xf32>, vector<40x32xf32>, vector<8x32xf32> -> vector<8x32xf32>
    %c448 = arith.constant 448 : index
    %c0_9 = arith.constant 0 : index
    %6 = vector.load %arg4[%c448, %c0_9] : memref<464x128xf32, #tpu.memory_space<vmem>>, vector<1x32xf32>
    %7 = vector.broadcast %6 : vector<1x32xf32> to vector<8x32xf32>
    %8 = arith.addf %5, %7 : vector<8x32xf32>
    %9 = math.tanh %8 : vector<8x32xf32>
    %c40 = arith.constant 40 : index
    %c0_10 = arith.constant 0 : index
    %10 = vector.load %arg4[%c40, %c0_10] : memref<464x128xf32, #tpu.memory_space<vmem>>, vector<32x32xf32>
    %cst_11 = arith.constant dense<0.000000e+00> : vector<8x32xf32>
    %11 = tpu.matmul %9, %10, %cst_11 {dimension_numbers = #tpu.dot_dimension_numbers<[1], [0], [0], [1], [0, 0, 1, 1], [], []>} : vector<8x32xf32>, vector<32x32xf32>, vector<8x32xf32> -> vector<8x32xf32>
    %c449 = arith.constant 449 : index
    %c0_12 = arith.constant 0 : index
    %12 = vector.load %arg4[%c449, %c0_12] : memref<464x128xf32, #tpu.memory_space<vmem>>, vector<1x32xf32>
    %13 = vector.broadcast %12 : vector<1x32xf32> to vector<8x32xf32>
    %14 = arith.addf %11, %13 : vector<8x32xf32>
    %15 = math.tanh %14 : vector<8x32xf32>
    %c72 = arith.constant 72 : index
    %c0_13 = arith.constant 0 : index
    %16 = vector.load %arg4[%c72, %c0_13] : memref<464x128xf32, #tpu.memory_space<vmem>>, vector<32x8xf32>
    %cst_14 = arith.constant dense<0.000000e+00> : vector<8x8xf32>
    %17 = tpu.matmul %15, %16, %cst_14 {dimension_numbers = #tpu.dot_dimension_numbers<[1], [0], [0], [1], [0, 0, 1, 1], [], []>} : vector<8x32xf32>, vector<32x8xf32>, vector<8x8xf32> -> vector<8x8xf32>
    %c450 = arith.constant 450 : index
    %c0_15 = arith.constant 0 : index
    %18 = vector.load %arg4[%c450, %c0_15] : memref<464x128xf32, #tpu.memory_space<vmem>>, vector<1x8xf32>
    %19 = vector.broadcast %18 : vector<1x8xf32> to vector<8x8xf32>
    %20 = arith.addf %17, %19 : vector<8x8xf32>
    %21 = vector.extract_strided_slice %20 {offsets = [0, 0], sizes = [2, 8], strides = [1, 1]} : vector<8x8xf32> to vector<2x8xf32>
    %c104 = arith.constant 104 : index
    %c0_16 = arith.constant 0 : index
    %22 = vector.load %arg4[%c104, %c0_16] : memref<464x128xf32, #tpu.memory_space<vmem>>, vector<8x32xf32>
    %cst_17 = arith.constant dense<0.000000e+00> : vector<2x32xf32>
    %23 = tpu.matmul %21, %22, %cst_17 {dimension_numbers = #tpu.dot_dimension_numbers<[1], [0], [0], [1], [0, 0, 1, 1], [], []>} : vector<2x8xf32>, vector<8x32xf32>, vector<2x32xf32> -> vector<2x32xf32>
    %24 = vector.extract_strided_slice %20 {offsets = [2, 0], sizes = [2, 8], strides = [1, 1]} : vector<8x8xf32> to vector<2x8xf32>
    %c112 = arith.constant 112 : index
    %c0_18 = arith.constant 0 : index
    %25 = vector.load %arg4[%c112, %c0_18] : memref<464x128xf32, #tpu.memory_space<vmem>>, vector<8x32xf32>
    %cst_19 = arith.constant dense<0.000000e+00> : vector<2x32xf32>
    %26 = tpu.matmul %24, %25, %cst_19 {dimension_numbers = #tpu.dot_dimension_numbers<[1], [0], [0], [1], [0, 0, 1, 1], [], []>} : vector<2x8xf32>, vector<8x32xf32>, vector<2x32xf32> -> vector<2x32xf32>
    %27 = arith.addf %23, %26 : vector<2x32xf32>
    %28 = vector.extract_strided_slice %20 {offsets = [4, 0], sizes = [2, 8], strides = [1, 1]} : vector<8x8xf32> to vector<2x8xf32>
    %c120 = arith.constant 120 : index
    %c0_20 = arith.constant 0 : index
    %29 = vector.load %arg4[%c120, %c0_20] : memref<464x128xf32, #tpu.memory_space<vmem>>, vector<8x32xf32>
    %cst_21 = arith.constant dense<0.000000e+00> : vector<2x32xf32>
    %30 = tpu.matmul %28, %29, %cst_21 {dimension_numbers = #tpu.dot_dimension_numbers<[1], [0], [0], [1], [0, 0, 1, 1], [], []>} : vector<2x8xf32>, vector<8x32xf32>, vector<2x32xf32> -> vector<2x32xf32>
    %31 = arith.addf %27, %30 : vector<2x32xf32>
    %32 = vector.extract_strided_slice %20 {offsets = [6, 0], sizes = [2, 8], strides = [1, 1]} : vector<8x8xf32> to vector<2x8xf32>
    %c128 = arith.constant 128 : index
    %c0_22 = arith.constant 0 : index
    %33 = vector.load %arg4[%c128, %c0_22] : memref<464x128xf32, #tpu.memory_space<vmem>>, vector<8x32xf32>
    %cst_23 = arith.constant dense<0.000000e+00> : vector<2x32xf32>
    %34 = tpu.matmul %32, %33, %cst_23 {dimension_numbers = #tpu.dot_dimension_numbers<[1], [0], [0], [1], [0, 0, 1, 1], [], []>} : vector<2x8xf32>, vector<8x32xf32>, vector<2x32xf32> -> vector<2x32xf32>
    %35 = arith.addf %31, %34 : vector<2x32xf32>
    %c451 = arith.constant 451 : index
    %c0_24 = arith.constant 0 : index
    %36 = vector.load %arg4[%c451, %c0_24] : memref<464x128xf32, #tpu.memory_space<vmem>>, vector<1x32xf32>
    %37 = vector.broadcast %36 : vector<1x32xf32> to vector<2x32xf32>
    %38 = arith.addf %35, %37 : vector<2x32xf32>
    %39 = math.tanh %38 : vector<2x32xf32>
    %c136 = arith.constant 136 : index
    %c0_25 = arith.constant 0 : index
    %40 = vector.load %arg4[%c136, %c0_25] : memref<464x128xf32, #tpu.memory_space<vmem>>, vector<32x32xf32>
    %cst_26 = arith.constant dense<0.000000e+00> : vector<2x32xf32>
    %41 = tpu.matmul %39, %40, %cst_26 {dimension_numbers = #tpu.dot_dimension_numbers<[1], [0], [0], [1], [0, 0, 1, 1], [], []>} : vector<2x32xf32>, vector<32x32xf32>, vector<2x32xf32> -> vector<2x32xf32>
    %c452 = arith.constant 452 : index
    %c0_27 = arith.constant 0 : index
    %42 = vector.load %arg4[%c452, %c0_27] : memref<464x128xf32, #tpu.memory_space<vmem>>, vector<1x32xf32>
    %43 = vector.broadcast %42 : vector<1x32xf32> to vector<2x32xf32>
    %44 = arith.addf %41, %43 : vector<2x32xf32>
    %45 = math.tanh %44 : vector<2x32xf32>
    %c168 = arith.constant 168 : index
    %c0_28 = arith.constant 0 : index
    %46 = vector.load %arg4[%c168, %c0_28] : memref<464x128xf32, #tpu.memory_space<vmem>>, vector<32x8xf32>
    %cst_29 = arith.constant dense<0.000000e+00> : vector<2x8xf32>
    %47 = tpu.matmul %45, %46, %cst_29 {dimension_numbers = #tpu.dot_dimension_numbers<[1], [0], [0], [1], [0, 0, 1, 1], [], []>} : vector<2x32xf32>, vector<32x8xf32>, vector<2x8xf32> -> vector<2x8xf32>
    %c453 = arith.constant 453 : index
    %c0_30 = arith.constant 0 : index
    %48 = vector.load %arg4[%c453, %c0_30] : memref<464x128xf32, #tpu.memory_space<vmem>>, vector<1x8xf32>
    %49 = vector.broadcast %48 : vector<1x8xf32> to vector<2x8xf32>
    %50 = arith.addf %47, %49 : vector<2x8xf32>
    %c200 = arith.constant 200 : index
    %c0_31 = arith.constant 0 : index
    %51 = vector.load %arg4[%c200, %c0_31] : memref<464x128xf32, #tpu.memory_space<vmem>>, vector<32x8xf32>
    %cst_32 = arith.constant dense<0.000000e+00> : vector<2x8xf32>
    %52 = tpu.matmul %45, %51, %cst_32 {dimension_numbers = #tpu.dot_dimension_numbers<[1], [0], [0], [1], [0, 0, 1, 1], [], []>} : vector<2x32xf32>, vector<32x8xf32>, vector<2x8xf32> -> vector<2x8xf32>
    %c454 = arith.constant 454 : index
    %c0_33 = arith.constant 0 : index
    %53 = vector.load %arg4[%c454, %c0_33] : memref<464x128xf32, #tpu.memory_space<vmem>>, vector<1x8xf32>
    %54 = vector.broadcast %53 : vector<1x8xf32> to vector<2x8xf32>
    %55 = arith.addf %52, %54 : vector<2x8xf32>
    %cst_34 = arith.constant 5.000000e-01 : f32
    %56 = vector.broadcast %cst_34 : f32 to vector<2x8xf32>
    %57 = arith.mulf %56, %55 : vector<2x8xf32>
    %58 = math.exp %57 : vector<2x8xf32>
    %59 = vector.extract_strided_slice %3 {offsets = [0, 0], sizes = [2, 8], strides = [1, 1]} : vector<10x8xf32> to vector<2x8xf32>
    %60 = arith.mulf %58, %59 : vector<2x8xf32>
    %61 = arith.addf %50, %60 : vector<2x8xf32>
    %c240 = arith.constant 240 : index
    %c0_35 = arith.constant 0 : index
    %62 = vector.load %arg4[%c240, %c0_35] : memref<464x128xf32, #tpu.memory_space<vmem>>, vector<8x32xf32>
    %cst_36 = arith.constant dense<0.000000e+00> : vector<2x32xf32>
    %63 = tpu.matmul %61, %62, %cst_36 {dimension_numbers = #tpu.dot_dimension_numbers<[1], [0], [0], [1], [0, 0, 1, 1], [], []>} : vector<2x8xf32>, vector<8x32xf32>, vector<2x32xf32> -> vector<2x32xf32>
    %c455 = arith.constant 455 : index
    %c0_37 = arith.constant 0 : index
    %64 = vector.load %arg4[%c455, %c0_37] : memref<464x128xf32, #tpu.memory_space<vmem>>, vector<1x32xf32>
    %65 = vector.broadcast %64 : vector<1x32xf32> to vector<2x32xf32>
    %66 = arith.addf %63, %65 : vector<2x32xf32>
    %67 = tpu.concatenate %66, %66, %66, %66 in 0 : vector<2x32xf32>, vector<2x32xf32>, vector<2x32xf32>, vector<2x32xf32> -> vector<8x32xf32>
    %c232 = arith.constant 232 : index
    %c0_38 = arith.constant 0 : index
    %68 = vector.load %arg4[%c232, %c0_38] : memref<464x128xf32, #tpu.memory_space<vmem>>, vector<8x32xf32>
    %cst_39 = arith.constant dense<0.000000e+00> : vector<8x32xf32>
    %69 = tpu.matmul %20, %68, %cst_39 {dimension_numbers = #tpu.dot_dimension_numbers<[1], [0], [0], [1], [0, 0, 1, 1], [], []>} : vector<8x8xf32>, vector<8x32xf32>, vector<8x32xf32> -> vector<8x32xf32>
    %70 = arith.addf %69, %67 : vector<8x32xf32>
    %71 = math.tanh %70 : vector<8x32xf32>
    %c248 = arith.constant 248 : index
    %c0_40 = arith.constant 0 : index
    %72 = vector.load %arg4[%c248, %c0_40] : memref<464x128xf32, #tpu.memory_space<vmem>>, vector<32x32xf32>
    %cst_41 = arith.constant dense<0.000000e+00> : vector<8x32xf32>
    %73 = tpu.matmul %71, %72, %cst_41 {dimension_numbers = #tpu.dot_dimension_numbers<[1], [0], [0], [1], [0, 0, 1, 1], [], []>} : vector<8x32xf32>, vector<32x32xf32>, vector<8x32xf32> -> vector<8x32xf32>
    %c456 = arith.constant 456 : index
    %c0_42 = arith.constant 0 : index
    %74 = vector.load %arg4[%c456, %c0_42] : memref<464x128xf32, #tpu.memory_space<vmem>>, vector<1x32xf32>
    %75 = vector.broadcast %74 : vector<1x32xf32> to vector<8x32xf32>
    %76 = arith.addf %73, %75 : vector<8x32xf32>
    %77 = math.tanh %76 : vector<8x32xf32>
    %c280 = arith.constant 280 : index
    %c0_43 = arith.constant 0 : index
    %78 = vector.load %arg4[%c280, %c0_43] : memref<464x128xf32, #tpu.memory_space<vmem>>, vector<32x8xf32>
    %cst_44 = arith.constant dense<0.000000e+00> : vector<8x8xf32>
    %79 = tpu.matmul %77, %78, %cst_44 {dimension_numbers = #tpu.dot_dimension_numbers<[1], [0], [0], [1], [0, 0, 1, 1], [], []>} : vector<8x32xf32>, vector<32x8xf32>, vector<8x8xf32> -> vector<8x8xf32>
    %c457 = arith.constant 457 : index
    %c0_45 = arith.constant 0 : index
    %80 = vector.load %arg4[%c457, %c0_45] : memref<464x128xf32, #tpu.memory_space<vmem>>, vector<1x8xf32>
    %81 = vector.broadcast %80 : vector<1x8xf32> to vector<8x8xf32>
    %82 = arith.addf %79, %81 : vector<8x8xf32>
    %c312 = arith.constant 312 : index
    %c0_46 = arith.constant 0 : index
    %83 = vector.load %arg4[%c312, %c0_46] : memref<464x128xf32, #tpu.memory_space<vmem>>, vector<32x8xf32>
    %cst_47 = arith.constant dense<0.000000e+00> : vector<8x8xf32>
    %84 = tpu.matmul %77, %83, %cst_47 {dimension_numbers = #tpu.dot_dimension_numbers<[1], [0], [0], [1], [0, 0, 1, 1], [], []>} : vector<8x32xf32>, vector<32x8xf32>, vector<8x8xf32> -> vector<8x8xf32>
    %c458 = arith.constant 458 : index
    %c0_48 = arith.constant 0 : index
    %85 = vector.load %arg4[%c458, %c0_48] : memref<464x128xf32, #tpu.memory_space<vmem>>, vector<1x8xf32>
    %86 = vector.broadcast %85 : vector<1x8xf32> to vector<8x8xf32>
    %87 = arith.addf %84, %86 : vector<8x8xf32>
    %cst_49 = arith.constant 5.000000e-01 : f32
    %88 = vector.broadcast %cst_49 : f32 to vector<8x8xf32>
    %89 = arith.mulf %88, %87 : vector<8x8xf32>
    %90 = math.exp %89 : vector<8x8xf32>
    %91 = vector.extract_strided_slice %3 {offsets = [2, 0], sizes = [8, 8], strides = [1, 1]} : vector<10x8xf32> to vector<8x8xf32>
    %92 = arith.mulf %90, %91 : vector<8x8xf32>
    %93 = arith.addf %82, %92 : vector<8x8xf32>
    %94 = tpu.concatenate %20, %93 in 0 : vector<8x8xf32>, vector<8x8xf32> -> vector<16x8xf32>
    %c344 = arith.constant 344 : index
    %c0_50 = arith.constant 0 : index
    %95 = vector.load %arg4[%c344, %c0_50] : memref<464x128xf32, #tpu.memory_space<vmem>>, vector<30x32xf32>
    %cst_51 = arith.constant dense<0.000000e+00> : vector<16x32xf32>
    %96 = tpu.matmul %1, %95, %cst_51 {dimension_numbers = #tpu.dot_dimension_numbers<[1], [0], [0], [1], [0, 0, 1, 1], [], []>} : vector<16x30xf32>, vector<30x32xf32>, vector<16x32xf32> -> vector<16x32xf32>
    %c376 = arith.constant 376 : index
    %c0_52 = arith.constant 0 : index
    %97 = vector.load %arg4[%c376, %c0_52] : memref<464x128xf32, #tpu.memory_space<vmem>>, vector<8x32xf32>
    %cst_53 = arith.constant dense<0.000000e+00> : vector<16x32xf32>
    %98 = tpu.matmul %94, %97, %cst_53 {dimension_numbers = #tpu.dot_dimension_numbers<[1], [0], [0], [1], [0, 0, 1, 1], [], []>} : vector<16x8xf32>, vector<8x32xf32>, vector<16x32xf32> -> vector<16x32xf32>
    %99 = arith.addf %96, %98 : vector<16x32xf32>
    %c459 = arith.constant 459 : index
    %c0_54 = arith.constant 0 : index
    %100 = vector.load %arg4[%c459, %c0_54] : memref<464x128xf32, #tpu.memory_space<vmem>>, vector<1x32xf32>
    %101 = vector.broadcast %100 : vector<1x32xf32> to vector<16x32xf32>
    %102 = arith.addf %99, %101 : vector<16x32xf32>
    %103 = math.tanh %102 : vector<16x32xf32>
    %c384 = arith.constant 384 : index
    %c0_55 = arith.constant 0 : index
    %104 = vector.load %arg4[%c384, %c0_55] : memref<464x128xf32, #tpu.memory_space<vmem>>, vector<32x32xf32>
    %cst_56 = arith.constant dense<0.000000e+00> : vector<16x32xf32>
    %105 = tpu.matmul %103, %104, %cst_56 {dimension_numbers = #tpu.dot_dimension_numbers<[1], [0], [0], [1], [0, 0, 1, 1], [], []>} : vector<16x32xf32>, vector<32x32xf32>, vector<16x32xf32> -> vector<16x32xf32>
    %c460 = arith.constant 460 : index
    %c0_57 = arith.constant 0 : index
    %106 = vector.load %arg4[%c460, %c0_57] : memref<464x128xf32, #tpu.memory_space<vmem>>, vector<1x32xf32>
    %107 = vector.broadcast %106 : vector<1x32xf32> to vector<16x32xf32>
    %108 = arith.addf %105, %107 : vector<16x32xf32>
    %109 = math.tanh %108 : vector<16x32xf32>
    %c416 = arith.constant 416 : index
    %c0_58 = arith.constant 0 : index
    %110 = vector.load %arg4[%c416, %c0_58] : memref<464x128xf32, #tpu.memory_space<vmem>>, vector<32x10xf32>
    %cst_59 = arith.constant dense<0.000000e+00> : vector<16x10xf32>
    %111 = tpu.matmul %109, %110, %cst_59 {dimension_numbers = #tpu.dot_dimension_numbers<[1], [0], [0], [1], [0, 0, 1, 1], [], []>} : vector<16x32xf32>, vector<32x10xf32>, vector<16x10xf32> -> vector<16x10xf32>
    %c461 = arith.constant 461 : index
    %c0_60 = arith.constant 0 : index
    %112 = vector.load %arg4[%c461, %c0_60] : memref<464x128xf32, #tpu.memory_space<vmem>>, vector<1x10xf32>
    %113 = vector.broadcast %112 : vector<1x10xf32> to vector<16x10xf32>
    %114 = arith.addf %111, %113 : vector<16x10xf32>
    %cst_61 = arith.constant 1.000000e+00 : f32
    %115 = vector.broadcast %cst_61 : f32 to vector<16x10xf32>
    %116 = arith.subf %114, %115 : vector<16x10xf32>
    %cst_62 = arith.constant 1.000000e+02 : f32
    %117 = vector.broadcast %cst_62 : f32 to vector<16x10xf32>
    %118 = arith.mulf %116, %117 : vector<16x10xf32>
    %119 = arith.subf %118, %2 : vector<16x10xf32>
    %120 = arith.mulf %119, %119 : vector<16x10xf32>
    %121 = vector.extract_strided_slice %120 {offsets = [0, 0], sizes = [8, 10], strides = [1, 1]} : vector<16x10xf32> to vector<8x10xf32>
    %122 = vector.shape_cast %121 : vector<8x10xf32> to vector<1x8x10xf32>
    %cst_63 = arith.constant dense<0.000000e+00> : vector<1xf32>
    %123 = vector.multi_reduction <add>, %122, %cst_63 [1, 2] : vector<1x8x10xf32> to vector<1xf32>
    %124 = vector.shape_cast %123 : vector<1xf32> to vector<1x1x1xf32>
    %125 = vector.extract %124[0, 0, 0] : f32 from vector<1x1x1xf32>
    %cst_64 = arith.constant 2.000000e+01 : f32
    %126 = arith.divf %125, %cst_64 : f32
    %127 = vector.extract_strided_slice %120 {offsets = [8, 0], sizes = [8, 10], strides = [1, 1]} : vector<16x10xf32> to vector<8x10xf32>
    %128 = vector.shape_cast %127 : vector<8x10xf32> to vector<1x8x10xf32>
    %cst_65 = arith.constant dense<0.000000e+00> : vector<1xf32>
    %129 = vector.multi_reduction <add>, %128, %cst_65 [1, 2] : vector<1x8x10xf32> to vector<1xf32>
    %130 = vector.shape_cast %129 : vector<1xf32> to vector<1x1x1xf32>
    %131 = vector.extract %130[0, 0, 0] : f32 from vector<1x1x1xf32>
    %cst_66 = arith.constant 2.000000e+01 : f32
    %132 = arith.divf %131, %cst_66 : f32
    %133 = tpu.concatenate %82, %50 in 0 : vector<8x8xf32>, vector<2x8xf32> -> vector<10x8xf32>
    %134 = tpu.concatenate %87, %55 in 0 : vector<8x8xf32>, vector<2x8xf32> -> vector<10x8xf32>
    %cst_67 = arith.constant 1.000000e+00 : f32
    %135 = vector.broadcast %cst_67 : f32 to vector<10x8xf32>
    %136 = arith.addf %135, %134 : vector<10x8xf32>
    %137 = arith.mulf %133, %133 : vector<10x8xf32>
    %138 = arith.subf %136, %137 : vector<10x8xf32>
    %139 = math.exp %134 : vector<10x8xf32>
    %140 = arith.subf %138, %139 : vector<10x8xf32>
    %141 = vector.shape_cast %140 : vector<10x8xf32> to vector<1x10x8xf32>
    %cst_68 = arith.constant dense<0.000000e+00> : vector<1xf32>
    %142 = vector.multi_reduction <add>, %141, %cst_68 [1, 2] : vector<1x10x8xf32> to vector<1xf32>
    %143 = vector.shape_cast %142 : vector<1xf32> to vector<1x1x1xf32>
    %144 = vector.extract %143[0, 0, 0] : f32 from vector<1x1x1xf32>
    %cst_69 = arith.constant -5.000000e-01 : f32
    %145 = arith.mulf %cst_69, %144 : f32
    %cst_70 = arith.constant 1.600000e+01 : f32
    %146 = arith.divf %145, %cst_70 : f32
    %147 = arith.addf %126, %132 : f32
    %cst_71 = arith.constant 5.000000e-01 : f32
    %148 = arith.mulf %cst_71, %146 : f32
    %149 = arith.addf %147, %148 : f32
    %c0_72 = arith.constant 0 : index
    %150 = memref.load %arg5[%c0_72] : memref<4xf32, #tpu.memory_space<smem>>
    memref.store %149, %arg5[%c0_72] : memref<4xf32, #tpu.memory_space<smem>>
    %c1 = arith.constant 1 : index
    %151 = memref.load %arg5[%c1] : memref<4xf32, #tpu.memory_space<smem>>
    memref.store %126, %arg5[%c1] : memref<4xf32, #tpu.memory_space<smem>>
    %c2 = arith.constant 2 : index
    %152 = memref.load %arg5[%c2] : memref<4xf32, #tpu.memory_space<smem>>
    memref.store %132, %arg5[%c2] : memref<4xf32, #tpu.memory_space<smem>>
    %c3 = arith.constant 3 : index
    %153 = memref.load %arg5[%c3] : memref<4xf32, #tpu.memory_space<smem>>
    memref.store %146, %arg5[%c3] : memref<4xf32, #tpu.memory_space<smem>>
    return
  }
}

</mosaic_0001>

<llo_original>
// kernel: tpu_custom_call.1
$region0: #{tpu_custom_call.1}
  #allocation0 [shape = 'u32[]', space=smem, size = 0x4, offset = 0x4, fixed_abs, tag = 'smem constant byte address 0x4 - core index']
  #allocation1 [shape = 'u32[72,128]{1,0:T(1,128)}', space=vmem, size = 0x9000, scoped, tag = 'internal scratch']
  %s0 = inlined_call_operand.vmem [shape: f32[8,40], index: 0, kind: input, shape index: {}]
  %s1 = inlined_call_operand.vmem [shape: f32[16,30], index: 1, kind: input, shape index: {}]
  %s2 = inlined_call_operand.hbm [shape: f32[16,10], index: 2, kind: input, shape index: {}]
  %s3 = inlined_call_operand.vmem [shape: f32[10,8], index: 3, kind: input, shape index: {}]
  %s4 = inlined_call_operand.hbm [shape: f32[464,128], index: 4, kind: input, shape index: {}]
  %s5 = inlined_call_operand.hbm [shape: f32[4], index: 5, kind: output, shape index: {}]
  %s6 = sld [smem:[#allocation0]]
  $region38: #{tpu_custom_call.1} parent=0
    _
  %s8 = ssub.s32 1, %s6
  %s9 = scalar_select 0, %s8, %s6
  $region1: #{tpu_custom_call.1} parent=0
    #allocation2 [shape = 'u8[8192]{0}', space=vmem, size = 0x2000, scoped, tag = 'input window, operand 2, single buffered']
    #allocation3 [shape = 's32[1]{0}', space=sflag, size = 0x4, scoped, tag = 'scoped memory for tpu_custom_call.1']
    #allocation4 [shape = 's32[1]{0}', space=sflag, size = 0x4, scoped, tag = 'scoped memory for tpu_custom_call.1']
    #allocation5 [shape = 'u8[237568]{0}', space=vmem, size = 0x3a000, scoped, tag = 'input window, operand 4, single buffered']
    #allocation6 [shape = 's32[1]{0}', space=sflag, size = 0x4, scoped, tag = 'scoped memory for tpu_custom_call.1']
    #allocation7 [shape = 'u8[512]{0}', space=smem, size = 0x200, scoped, tag = 'output window, operand 0, single buffered']
    %10 = vsyncpa [#allocation3], 0
    %11 = vsyncpa [#allocation6], 0
    %12 = vsyncpa [#allocation4], 0
    // Predicated region
    $region2: #{tpu_custom_call.1} parent=1 // pred_check
      _
    $region3: #{tpu_custom_call.1} parent=1 // pred_check_branch
      %14 = sbr.rel (0) target = $region5
    $region4: #{tpu_custom_call.1} parent=1 // pred_region
      _
    $region5: #{tpu_custom_call.1} parent=1 // pred_fallthru
      _
    // Predicated region
    $region6: #{tpu_custom_call.1} parent=1 // pred_check
      _
    $region7: #{tpu_custom_call.1} parent=1 // pred_check_branch
      %16 = sbr.rel (0) target = $region9
    $region8: #{tpu_custom_call.1} parent=1 // pred_region
      _
    $region9: #{tpu_custom_call.1} parent=1 // pred_fallthru
      _
    // Predicated region
    $region10: #{tpu_custom_call.1} parent=1 // pred_check
      _
    $region11: #{tpu_custom_call.1} parent=1 // pred_check_branch
      %18 = sbr.rel (0) target = $region13
    $region12: #{tpu_custom_call.1} parent=1 // pred_region
      %20 = vsyncadd [#allocation3], 0
      %s21 = sshll.u32 %s2, 4
      %s22 = int_to_ptr.hbm [resolvable:$true] %s21
      %s23 = sshll.u32 [#allocation2], 4
      %s24 = int_to_ptr.vmem [resolvable:$true] %s23
      %29 = dma.hbm_to_vmem [thread:$0]  %s22, 256, %s24, [#allocation3], 128, 128, 8
    $region13: #{tpu_custom_call.1} parent=1 // pred_fallthru
      _
    // Predicated region
    $region14: #{tpu_custom_call.1} parent=1 // pred_check
      _
    $region15: #{tpu_custom_call.1} parent=1 // pred_check_branch
      %31 = sbr.rel (0) target = $region17
    $region16: #{tpu_custom_call.1} parent=1 // pred_region
      _
    $region17: #{tpu_custom_call.1} parent=1 // pred_fallthru
      _
    // Predicated region
    $region18: #{tpu_custom_call.1} parent=1 // pred_check
      _
    $region19: #{tpu_custom_call.1} parent=1 // pred_check_branch
      %33 = sbr.rel (0) target = $region21
    $region20: #{tpu_custom_call.1} parent=1 // pred_region
      %35 = vsyncadd [#allocation6], 0
      %s36 = sshll.u32 %s4, 4
      %s37 = int_to_ptr.hbm [resolvable:$true] %s36
      %s38 = sshll.u32 [#allocation5], 4
      %s39 = int_to_ptr.vmem [resolvable:$true] %s38
      %44 = dma.hbm_to_vmem [thread:$0]  %s37, 7424, %s39, [#allocation6], 128, 128, 8
    $region21: #{tpu_custom_call.1} parent=1 // pred_fallthru
      _
    // Predicated region
    $region22: #{tpu_custom_call.1} parent=1 // pred_check
      _
    $region23: #{tpu_custom_call.1} parent=1 // pred_check_branch
      %46 = sbr.rel (0) target = $region25
    $region24: #{tpu_custom_call.1} parent=1 // pred_region
      %48 = dma.done [#allocation3], 256
    $region25: #{tpu_custom_call.1} parent=1 // pred_fallthru
      _
    // Predicated region
    $region26: #{tpu_custom_call.1} parent=1 // pred_check
      _
    $region27: #{tpu_custom_call.1} parent=1 // pred_check_branch
      %50 = sbr.rel (0) target = $region29
    $region28: #{tpu_custom_call.1} parent=1 // pred_region
      %52 = dma.done [#allocation6], 7424
    $region29: #{tpu_custom_call.1} parent=1 // pred_fallthru
      _
    %v53 = vld [vmem:[%s0] sm:$0xff]
    %v54 = vld [vmem:[%s1] sm:$0xff]
    %v55 = vld [vmem:[%s1 + $0x8] sm:$0xff]
    %v56 = vld [vmem:[#allocation2] sm:$0xff]
    %v57 = vld [vmem:[#allocation2 + $0x8] sm:$0xff]
    %v58 = vld [vmem:[%s3] sm:$0xff]
    %v59 = vld [vmem:[%s3 + $0x8] sm:$0x3]
    %v60 = vld [vmem:[#allocation5] sm:$0xff]
    %v61 = vld [vmem:[#allocation5 + $0x8] sm:$0xff]
    %v62 = vld [vmem:[#allocation5 + $0x10] sm:$0xff]
    %v63 = vld [vmem:[#allocation5 + $0x18] sm:$0xff]
    %v64 = vld [vmem:[#allocation5 + $0x20] sm:$0xff]
    %v65 = vld [vmem:[#allocation5 + $0x1c0] sm:$0x1]
    %v66 = vperm.slane %v65, 0
    %vm67 = vcmask 326656
    %v69 = vsel %vm67, %v53, 0
    %71 = vmatpush.msra.mxu0 0.0
    %72 = vmatpush.msra.mxu0 0.0
    %73 = vmatpush.msra.mxu0 0.0
    %74 = vmatpush.msra.mxu0 0.0
    %75 = vmatpush.msra.mxu0 0.0
    %76 = vmatpush.msra.mxu0 0.0
    %77 = vmatpush.msra.mxu0 0.0
    %78 = vmatpush.msra.mxu0 0.0
    %79 = vmatpush.msra.mxu0 0.0
    %80 = vmatpush.msra.mxu0 0.0
    %81 = vmatpush.msra.mxu0 0.0
    %82 = vmatpush.msra.mxu0 %v64
    %83 = vmatpush.msra.mxu0 %v63
    %84 = vmatpush.msra.mxu0 %v62
    %85 = vmatpush.msra.mxu0 %v61
    %86 = vmatpush.msra.mxu0 %v60
    %87 = vmatmul.f32.gmra.mxu0 %v69
    %v88 = vpop.f32.mrf.mxu0
    %v89 = vadd.f32 %v66, %v88
    %90 = vdwg.mxu0
    %v91 = vtanh.pop %v89
    %v92 = vld [vmem:[#allocation5 + $0x28] sm:$0xff]
    %v93 = vld [vmem:[#allocation5 + $0x30] sm:$0xff]
    %v94 = vld [vmem:[#allocation5 + $0x38] sm:$0xff]
    %v95 = vld [vmem:[#allocation5 + $0x40] sm:$0xff]
    %v96 = vld [vmem:[#allocation5 + $0x1c1] sm:$0x1]
    %v97 = vperm.slane %v96, 0
    %vm98 = vcmask 261120
    %v100 = vsel %vm98, %v91, 0
    %102 = vmatpush.msra.mxu0 0.0
    %103 = vmatpush.msra.mxu0 0.0
    %104 = vmatpush.msra.mxu0 0.0
    %105 = vmatpush.msra.mxu0 0.0
    %106 = vmatpush.msra.mxu0 0.0
    %107 = vmatpush.msra.mxu0 0.0
    %108 = vmatpush.msra.mxu0 0.0
    %109 = vmatpush.msra.mxu0 0.0
    %110 = vmatpush.msra.mxu0 0.0
    %111 = vmatpush.msra.mxu0 0.0
    %112 = vmatpush.msra.mxu0 0.0
    %113 = vmatpush.msra.mxu0 0.0
    %114 = vmatpush.msra.mxu0 %v95
    %115 = vmatpush.msra.mxu0 %v94
    %116 = vmatpush.msra.mxu0 %v93
    %117 = vmatpush.msra.mxu0 %v92
    %118 = vmatmul.f32.gmra.mxu0 %v100
    %v119 = vpop.f32.mrf.mxu0
    %v120 = vadd.f32 %v97, %v119
    %121 = vdwg.mxu0
    %v122 = vtanh.pop %v120
    %v123 = vld [vmem:[#allocation5 + $0x48] sm:$0xff]
    %v124 = vld [vmem:[#allocation5 + $0x50] sm:$0xff]
    %v125 = vld [vmem:[#allocation5 + $0x58] sm:$0xff]
    %v126 = vld [vmem:[#allocation5 + $0x60] sm:$0xff]
    %v127 = vld [vmem:[#allocation5 + $0x1c2] sm:$0x1]
    %v128 = vperm.slane %v127, 0
    %v130 = vsel %vm98, %v122, 0
    %132 = vmatpush.msra.mxu0 0.0
    %133 = vmatpush.msra.mxu0 0.0
    %134 = vmatpush.msra.mxu0 0.0
    %135 = vmatpush.msra.mxu0 0.0
    %136 = vmatpush.msra.mxu0 0.0
    %137 = vmatpush.msra.mxu0 0.0
    %138 = vmatpush.msra.mxu0 0.0
    %139 = vmatpush.msra.mxu0 0.0
    %140 = vmatpush.msra.mxu0 0.0
    %141 = vmatpush.msra.mxu0 0.0
    %142 = vmatpush.msra.mxu0 0.0
    %143 = vmatpush.msra.mxu0 0.0
    %144 = vmatpush.msra.mxu0 %v126
    %145 = vmatpush.msra.mxu0 %v125
    %146 = vmatpush.msra.mxu0 %v124
    %147 = vmatpush.msra.mxu0 %v123
    %148 = vmatmul.f32.gmra.mxu0 %v130
    %v149 = vpop.f32.mrf.mxu0
    %v150 = vadd.f32 %v128, %v149
    %151 = vdwg.mxu0
    %v152 = vld [vmem:[#allocation5 + $0x68] sm:$0xff]
    %v153 = vld [vmem:[#allocation5 + $0x70] sm:$0xff]
    %v155 = vrot.slane %v150, 2
    %vm156 = vcmask 64512
    %v157 = vsel %vm156, %v155, 0
    %159 = vmatpush.msra.mxu0 0.0
    %160 = vmatpush.msra.mxu0 0.0
    %161 = vmatpush.msra.mxu0 0.0
    %162 = vmatpush.msra.mxu0 0.0
    %163 = vmatpush.msra.mxu0 0.0
    %164 = vmatpush.msra.mxu0 0.0
    %165 = vmatpush.msra.mxu0 0.0
    %166 = vmatpush.msra.mxu0 0.0
    %167 = vmatpush.msra.mxu0 0.0
    %168 = vmatpush.msra.mxu0 0.0
    %169 = vmatpush.msra.mxu0 0.0
    %170 = vmatpush.msra.mxu0 0.0
    %171 = vmatpush.msra.mxu0 0.0
    %172 = vmatpush.msra.mxu0 0.0
    %173 = vmatpush.msra.mxu0 0.0
    %174 = vmatpush.msra.mxu0 %v153
    %175 = vmatmul.f32.gmra.mxu0 %v157
    %v176 = vpop.f32.mrf.mxu0
    %v177 = vadd.f32 0.0, %v176
    %178 = vdwg.mxu0
    %v179 = vsel %vm156, %v150, 0
    %181 = vmatpush.msra.mxu0 0.0
    %182 = vmatpush.msra.mxu0 0.0
    %183 = vmatpush.msra.mxu0 0.0
    %184 = vmatpush.msra.mxu0 0.0
    %185 = vmatpush.msra.mxu0 0.0
    %186 = vmatpush.msra.mxu0 0.0
    %187 = vmatpush.msra.mxu0 0.0
    %188 = vmatpush.msra.mxu0 0.0
    %189 = vmatpush.msra.mxu0 0.0
    %190 = vmatpush.msra.mxu0 0.0
    %191 = vmatpush.msra.mxu0 0.0
    %192 = vmatpush.msra.mxu0 0.0
    %193 = vmatpush.msra.mxu0 0.0
    %194 = vmatpush.msra.mxu0 0.0
    %195 = vmatpush.msra.mxu0 0.0
    %196 = vmatpush.msra.mxu0 %v152
    %197 = vmatmul.f32.gmra.mxu0 %v179
    %v198 = vpop.f32.mrf.mxu0
    %v199 = vadd.f32 %v177, %v198
    %200 = vdwg.mxu0
    %v201 = vld [vmem:[#allocation5 + $0x78] sm:$0xff]
    %v202 = vrot.slane %v150, 4
    %v203 = vsel %vm156, %v202, 0
    %205 = vmatpush.msra.mxu0 0.0
    %206 = vmatpush.msra.mxu0 0.0
    %207 = vmatpush.msra.mxu0 0.0
    %208 = vmatpush.msra.mxu0 0.0
    %209 = vmatpush.msra.mxu0 0.0
    %210 = vmatpush.msra.mxu0 0.0
    %211 = vmatpush.msra.mxu0 0.0
    %212 = vmatpush.msra.mxu0 0.0
    %213 = vmatpush.msra.mxu0 0.0
    %214 = vmatpush.msra.mxu0 0.0
    %215 = vmatpush.msra.mxu0 0.0
    %216 = vmatpush.msra.mxu0 0.0
    %217 = vmatpush.msra.mxu0 0.0
    %218 = vmatpush.msra.mxu0 0.0
    %219 = vmatpush.msra.mxu0 0.0
    %220 = vmatpush.msra.mxu0 %v201
    %221 = vmatmul.f32.gmra.mxu0 %v203
    %v222 = vpop.f32.mrf.mxu0
    %v223 = vadd.f32 0.0, %v222
    %224 = vdwg.mxu0
    %v225 = vadd.f32 %v199, %v223
    %v226 = vld [vmem:[#allocation5 + $0x80] sm:$0xff]
    %v227 = vrot.slane %v150, 6
    %v228 = vsel %vm156, %v227, 0
    %230 = vmatpush.msra.mxu0 0.0
    %231 = vmatpush.msra.mxu0 0.0
    %232 = vmatpush.msra.mxu0 0.0
    %233 = vmatpush.msra.mxu0 0.0
    %234 = vmatpush.msra.mxu0 0.0
    %235 = vmatpush.msra.mxu0 0.0
    %236 = vmatpush.msra.mxu0 0.0
    %237 = vmatpush.msra.mxu0 0.0
    %238 = vmatpush.msra.mxu0 0.0
    %239 = vmatpush.msra.mxu0 0.0
    %240 = vmatpush.msra.mxu0 0.0
    %241 = vmatpush.msra.mxu0 0.0
    %242 = vmatpush.msra.mxu0 0.0
    %243 = vmatpush.msra.mxu0 0.0
    %244 = vmatpush.msra.mxu0 0.0
    %245 = vmatpush.msra.mxu0 %v226
    %246 = vmatmul.f32.gmra.mxu0 %v228
    %v247 = vpop.f32.mrf.mxu0
    %v248 = vadd.f32 0.0, %v247
    %249 = vdwg.mxu0
    %v250 = vadd.f32 %v225, %v248
    %v251 = vld [vmem:[#allocation5 + $0x1c3] sm:$0x1]
    %v252 = vperm.slane %v251, 0
    %v253 = vadd.f32 %v250, %v252
    %v254 = vtanh.pop %v253
    %v255 = vld [vmem:[#allocation5 + $0x88] sm:$0xff]
    %v256 = vld [vmem:[#allocation5 + $0x90] sm:$0xff]
    %v257 = vld [vmem:[#allocation5 + $0x98] sm:$0xff]
    %v258 = vld [vmem:[#allocation5 + $0xa0] sm:$0xff]
    %v259 = vld [vmem:[#allocation5 + $0x1c4] sm:$0x1]
    %v260 = vperm.slane %v259, 0
    %v262 = vsel %vm98, %v254, 0
    %264 = vmatpush.msra.mxu0 0.0
    %265 = vmatpush.msra.mxu0 0.0
    %266 = vmatpush.msra.mxu0 0.0
    %267 = vmatpush.msra.mxu0 0.0
    %268 = vmatpush.msra.mxu0 0.0
    %269 = vmatpush.msra.mxu0 0.0
    %270 = vmatpush.msra.mxu0 0.0
    %271 = vmatpush.msra.mxu0 0.0
    %272 = vmatpush.msra.mxu0 0.0
    %273 = vmatpush.msra.mxu0 0.0
    %274 = vmatpush.msra.mxu0 0.0
    %275 = vmatpush.msra.mxu0 0.0
    %276 = vmatpush.msra.mxu0 %v258
    %277 = vmatpush.msra.mxu0 %v257
    %278 = vmatpush.msra.mxu0 %v256
    %279 = vmatpush.msra.mxu0 %v255
    %280 = vmatmul.f32.gmra.mxu0 %v262
    %v281 = vpop.f32.mrf.mxu0
    %v282 = vadd.f32 %v260, %v281
    %283 = vdwg.mxu0
    %v284 = vtanh.pop %v282
    %v285 = vld [vmem:[#allocation5 + $0xa8] sm:$0xff]
    %v286 = vld [vmem:[#allocation5 + $0xb0] sm:$0xff]
    %v287 = vld [vmem:[#allocation5 + $0xb8] sm:$0xff]
    %v288 = vld [vmem:[#allocation5 + $0xc0] sm:$0xff]
    %v289 = vld [vmem:[#allocation5 + $0x1c5] sm:$0x1]
    %v290 = vperm.slane %v289, 0
    %v292 = vsel %vm98, %v284, 0
    %294 = vmatpush.msra.mxu0 0.0
    %295 = vmatpush.msra.mxu0 0.0
    %296 = vmatpush.msra.mxu0 0.0
    %297 = vmatpush.msra.mxu0 0.0
    %298 = vmatpush.msra.mxu0 0.0
    %299 = vmatpush.msra.mxu0 0.0
    %300 = vmatpush.msra.mxu0 0.0
    %301 = vmatpush.msra.mxu0 0.0
    %302 = vmatpush.msra.mxu0 0.0
    %303 = vmatpush.msra.mxu0 0.0
    %304 = vmatpush.msra.mxu0 0.0
    %305 = vmatpush.msra.mxu0 0.0
    %306 = vmatpush.msra.mxu0 %v288
    %307 = vmatpush.msra.mxu0 %v287
    %308 = vmatpush.msra.mxu0 %v286
    %309 = vmatpush.msra.mxu0 %v285
    %310 = vmatmul.f32.gmra.mxu0 %v292
    %v311 = vpop.f32.mrf.mxu0
    %v312 = vadd.f32 %v290, %v311
    %313 = vdwg.mxu0
    %v314 = vld [vmem:[#allocation5 + $0xc8] sm:$0xff]
    %v315 = vld [vmem:[#allocation5 + $0xd0] sm:$0xff]
    %v316 = vld [vmem:[#allocation5 + $0xd8] sm:$0xff]
    %v317 = vld [vmem:[#allocation5 + $0xe0] sm:$0xff]
    %v318 = vld [vmem:[#allocation5 + $0x1c6] sm:$0x1]
    %v319 = vperm.slane %v318, 0
    %320 = vmatpush.msra.mxu0 0.0
    %321 = vmatpush.msra.mxu0 0.0
    %322 = vmatpush.msra.mxu0 0.0
    %323 = vmatpush.msra.mxu0 0.0
    %324 = vmatpush.msra.mxu0 0.0
    %325 = vmatpush.msra.mxu0 0.0
    %326 = vmatpush.msra.mxu0 0.0
    %327 = vmatpush.msra.mxu0 0.0
    %328 = vmatpush.msra.mxu0 0.0
    %329 = vmatpush.msra.mxu0 0.0
    %330 = vmatpush.msra.mxu0 0.0
    %331 = vmatpush.msra.mxu0 0.0
    %332 = vmatpush.msra.mxu0 %v317
    %333 = vmatpush.msra.mxu0 %v316
    %334 = vmatpush.msra.mxu0 %v315
    %335 = vmatpush.msra.mxu0 %v314
    %336 = vmatmul.f32.gmra.mxu0 %v292
    %v337 = vpop.f32.mrf.mxu0
    %v338 = vadd.f32 %v319, %v337
    %339 = vdwg.mxu0
    %v340 = vmul.f32 %v338, 0.5
    %v341 = vmul.f32 %v340, 1.442695
    %v342 = vpow.pop %v341
    %v343 = vmul.f32 %v342, %v58
    %v344 = vadd.f32 %v312, %v343
    %v345 = vld [vmem:[#allocation5 + $0xf0] sm:$0xff]
    %v346 = vld [vmem:[#allocation5 + $0x1c7] sm:$0x1]
    %v347 = vperm.slane %v346, 0
    %v349 = vsel %vm156, %v344, 0
    %351 = vmatpush.msra.mxu0 0.0
    %352 = vmatpush.msra.mxu0 0.0
    %353 = vmatpush.msra.mxu0 0.0
    %354 = vmatpush.msra.mxu0 0.0
    %355 = vmatpush.msra.mxu0 0.0
    %356 = vmatpush.msra.mxu0 0.0
    %357 = vmatpush.msra.mxu0 0.0
    %358 = vmatpush.msra.mxu0 0.0
    %359 = vmatpush.msra.mxu0 0.0
    %360 = vmatpush.msra.mxu0 0.0
    %361 = vmatpush.msra.mxu0 0.0
    %362 = vmatpush.msra.mxu0 0.0
    %363 = vmatpush.msra.mxu0 0.0
    %364 = vmatpush.msra.mxu0 0.0
    %365 = vmatpush.msra.mxu0 0.0
    %366 = vmatpush.msra.mxu0 %v345
    %367 = vmatmul.f32.gmra.mxu0 %v349
    %v368 = vpop.f32.mrf.mxu0
    %v369 = vadd.f32 %v347, %v368
    %370 = vdwg.mxu0
    %v372 = vrot.slane %v369, 6
    %v374 = vrot.slane %v369, 4
    %v376 = vrot.slane %v369, 2
    %vm378 = vcmask 1041408
    %v379 = vsel %vm378, %v369, %v372
    %vm380 = vcmask 1043456
    %v381 = vsel %vm380, %v379, %v374
    %vm382 = vcmask 1045504
    %v383 = vsel %vm382, %v381, %v376
    %v384 = vld [vmem:[#allocation5 + $0xe8] sm:$0xff]
    %385 = vmatpush.msra.mxu0 0.0
    %386 = vmatpush.msra.mxu0 0.0
    %387 = vmatpush.msra.mxu0 0.0
    %388 = vmatpush.msra.mxu0 0.0
    %389 = vmatpush.msra.mxu0 0.0
    %390 = vmatpush.msra.mxu0 0.0
    %391 = vmatpush.msra.mxu0 0.0
    %392 = vmatpush.msra.mxu0 0.0
    %393 = vmatpush.msra.mxu0 0.0
    %394 = vmatpush.msra.mxu0 0.0
    %395 = vmatpush.msra.mxu0 0.0
    %396 = vmatpush.msra.mxu0 0.0
    %397 = vmatpush.msra.mxu0 0.0
    %398 = vmatpush.msra.mxu0 0.0
    %399 = vmatpush.msra.mxu0 0.0
    %400 = vmatpush.msra.mxu0 %v384
    %401 = vmatmul.f32.gmra.mxu0 %v179
    %v402 = vpop.f32.mrf.mxu0
    %v403 = vadd.f32 %v383, %v402
    %404 = vdwg.mxu0
    %v405 = vtanh.pop %v403
    %v406 = vld [vmem:[#allocation5 + $0xf8] sm:$0xff]
    %v407 = vld [vmem:[#allocation5 + $0x100] sm:$0xff]
    %v408 = vld [vmem:[#allocation5 + $0x108] sm:$0xff]
    %v409 = vld [vmem:[#allocation5 + $0x110] sm:$0xff]
    %v410 = vld [vmem:[#allocation5 + $0x1c8] sm:$0x1]
    %v411 = vperm.slane %v410, 0
    %v413 = vsel %vm98, %v405, 0
    %415 = vmatpush.msra.mxu0 0.0
    %416 = vmatpush.msra.mxu0 0.0
    %417 = vmatpush.msra.mxu0 0.0
    %418 = vmatpush.msra.mxu0 0.0
    %419 = vmatpush.msra.mxu0 0.0
    %420 = vmatpush.msra.mxu0 0.0
    %421 = vmatpush.msra.mxu0 0.0
    %422 = vmatpush.msra.mxu0 0.0
    %423 = vmatpush.msra.mxu0 0.0
    %424 = vmatpush.msra.mxu0 0.0
    %425 = vmatpush.msra.mxu0 0.0
    %426 = vmatpush.msra.mxu0 0.0
    %427 = vmatpush.msra.mxu0 %v409
    %428 = vmatpush.msra.mxu0 %v408
    %429 = vmatpush.msra.mxu0 %v407
    %430 = vmatpush.msra.mxu0 %v406
    %431 = vmatmul.f32.gmra.mxu0 %v413
    %v432 = vpop.f32.mrf.mxu0
    %v433 = vadd.f32 %v411, %v432
    %434 = vdwg.mxu0
    %v435 = vtanh.pop %v433
    %v436 = vld [vmem:[#allocation5 + $0x118] sm:$0xff]
    %v437 = vld [vmem:[#allocation5 + $0x120] sm:$0xff]
    %v438 = vld [vmem:[#allocation5 + $0x128] sm:$0xff]
    %v439 = vld [vmem:[#allocation5 + $0x130] sm:$0xff]
    %v440 = vld [vmem:[#allocation5 + $0x1c9] sm:$0x1]
    %v441 = vperm.slane %v440, 0
    %v443 = vsel %vm98, %v435, 0
    %445 = vmatpush.msra.mxu0 0.0
    %446 = vmatpush.msra.mxu0 0.0
    %447 = vmatpush.msra.mxu0 0.0
    %448 = vmatpush.msra.mxu0 0.0
    %449 = vmatpush.msra.mxu0 0.0
    %450 = vmatpush.msra.mxu0 0.0
    %451 = vmatpush.msra.mxu0 0.0
    %452 = vmatpush.msra.mxu0 0.0
    %453 = vmatpush.msra.mxu0 0.0
    %454 = vmatpush.msra.mxu0 0.0
    %455 = vmatpush.msra.mxu0 0.0
    %456 = vmatpush.msra.mxu0 0.0
    %457 = vmatpush.msra.mxu0 %v439
    %458 = vmatpush.msra.mxu0 %v438
    %459 = vmatpush.msra.mxu0 %v437
    %460 = vmatpush.msra.mxu0 %v436
    %461 = vmatmul.f32.gmra.mxu0 %v443
    %v462 = vpop.f32.mrf.mxu0
    %v463 = vadd.f32 %v441, %v462
    %464 = vdwg.mxu0
    %v465 = vld [vmem:[#allocation5 + $0x138] sm:$0xff]
    %v466 = vld [vmem:[#allocation5 + $0x140] sm:$0xff]
    %v467 = vld [vmem:[#allocation5 + $0x148] sm:$0xff]
    %v468 = vld [vmem:[#allocation5 + $0x150] sm:$0xff]
    %v469 = vld [vmem:[#allocation5 + $0x1ca] sm:$0x1]
    %v470 = vperm.slane %v469, 0
    %471 = vmatpush.msra.mxu0 0.0
    %472 = vmatpush.msra.mxu0 0.0
    %473 = vmatpush.msra.mxu0 0.0
    %474 = vmatpush.msra.mxu0 0.0
    %475 = vmatpush.msra.mxu0 0.0
    %476 = vmatpush.msra.mxu0 0.0
    %477 = vmatpush.msra.mxu0 0.0
    %478 = vmatpush.msra.mxu0 0.0
    %479 = vmatpush.msra.mxu0 0.0
    %480 = vmatpush.msra.mxu0 0.0
    %481 = vmatpush.msra.mxu0 0.0
    %482 = vmatpush.msra.mxu0 0.0
    %483 = vmatpush.msra.mxu0 %v468
    %484 = vmatpush.msra.mxu0 %v467
    %485 = vmatpush.msra.mxu0 %v466
    %486 = vmatpush.msra.mxu0 %v465
    %487 = vmatmul.f32.gmra.mxu0 %v443
    %v488 = vpop.f32.mrf.mxu0
    %v489 = vadd.f32 %v470, %v488
    %490 = vdwg.mxu0
    %v491 = vmul.f32 %v489, 0.5
    %v492 = vmul.f32 %v491, 1.442695
    %v493 = vpow.pop %v492
    %v496 = vrot.slane %v58, 2
    %v497 = vrot.slane %v59, 2
    %v498 = vsel %vm382, %v496, %v497
    %v500 = vmul.f32 %v493, %v498
    %v501 = vadd.f32 %v463, %v500
    %v502 = vld [vmem:[#allocation5 + $0x158] sm:$0xff]
    %v503 = vld [vmem:[#allocation5 + $0x160] sm:$0xff]
    %v504 = vld [vmem:[#allocation5 + $0x168] sm:$0xff]
    %v505 = vld [vmem:[#allocation5 + $0x170] sm:$0x3f]
    %v506 = vld [vmem:[#allocation5 + $0x178] sm:$0xff]
    %v508 = vsel %vm156, %v501, 0
    %510 = vmatpush.msra.mxu0 0.0
    %511 = vmatpush.msra.mxu0 0.0
    %512 = vmatpush.msra.mxu0 0.0
    %513 = vmatpush.msra.mxu0 0.0
    %514 = vmatpush.msra.mxu0 0.0
    %515 = vmatpush.msra.mxu0 0.0
    %516 = vmatpush.msra.mxu0 0.0
    %517 = vmatpush.msra.mxu0 0.0
    %518 = vmatpush.msra.mxu0 0.0
    %519 = vmatpush.msra.mxu0 0.0
    %520 = vmatpush.msra.mxu0 0.0
    %521 = vmatpush.msra.mxu0 0.0
    %522 = vmatpush.msra.mxu0 0.0
    %523 = vmatpush.msra.mxu0 0.0
    %524 = vmatpush.msra.mxu0 0.0
    %525 = vmatpush.msra.mxu0 %v506
    %526 = vmatmul.f32.gmra.mxu0 %v179
    %v527 = vpop.f32.mrf.mxu0
    %v528 = vadd.f32 0.0, %v527
    %529 = vmatmul.f32.gmra.mxu0 %v508
    %v530 = vpop.f32.mrf.mxu0
    %v531 = vadd.f32 0.0, %v530
    %532 = vdwg.mxu0
    %vm533 = vcmask 244736
    %v535 = vsel %vm533, %v54, 0
    %v538 = vsel %vm533, %v55, 0
    %v541 = vsel %vm382, %v505, 0
    %543 = vmatpush.msra.mxu0 0.0
    %544 = vmatpush.msra.mxu0 0.0
    %545 = vmatpush.msra.mxu0 0.0
    %546 = vmatpush.msra.mxu0 0.0
    %547 = vmatpush.msra.mxu0 0.0
    %548 = vmatpush.msra.mxu0 0.0
    %549 = vmatpush.msra.mxu0 0.0
    %550 = vmatpush.msra.mxu0 0.0
    %551 = vmatpush.msra.mxu0 0.0
    %552 = vmatpush.msra.mxu0 0.0
    %553 = vmatpush.msra.mxu0 0.0
    %554 = vmatpush.msra.mxu0 0.0
    %555 = vmatpush.msra.mxu0 %v541
    %556 = vmatpush.msra.mxu0 %v504
    %557 = vmatpush.msra.mxu0 %v503
    %558 = vmatpush.msra.mxu0 %v502
    %559 = vmatmul.f32.gmra.mxu0 %v535
    %v560 = vpop.f32.mrf.mxu0
    %v561 = vadd.f32 %v528, %v560
    %562 = vmatmul.f32.gmra.mxu0 %v538
    %v563 = vpop.f32.mrf.mxu0
    %v564 = vadd.f32 %v531, %v563
    %565 = vdwg.mxu0
    %v566 = vld [vmem:[#allocation5 + $0x1cb] sm:$0x1]
    %v567 = vperm.slane %v566, 0
    %v568 = vadd.f32 %v561, %v567
    %v569 = vadd.f32 %v564, %v567
    %v570 = vtanh.pop %v568
    %v571 = vtanh.pop %v569
    %v572 = vld [vmem:[#allocation5 + $0x180] sm:$0xff]
    %v573 = vld [vmem:[#allocation5 + $0x188] sm:$0xff]
    %v574 = vld [vmem:[#allocation5 + $0x190] sm:$0xff]
    %v575 = vld [vmem:[#allocation5 + $0x198] sm:$0xff]
    %v576 = vld [vmem:[#allocation5 + $0x1cc] sm:$0x1]
    %v577 = vperm.slane %v576, 0
    %v579 = vsel %vm98, %v570, 0
    %v582 = vsel %vm98, %v571, 0
    %584 = vmatpush.msra.mxu0 0.0
    %585 = vmatpush.msra.mxu0 0.0
    %586 = vmatpush.msra.mxu0 0.0
    %587 = vmatpush.msra.mxu0 0.0
    %588 = vmatpush.msra.mxu0 0.0
    %589 = vmatpush.msra.mxu0 0.0
    %590 = vmatpush.msra.mxu0 0.0
    %591 = vmatpush.msra.mxu0 0.0
    %592 = vmatpush.msra.mxu0 0.0
    %593 = vmatpush.msra.mxu0 0.0
    %594 = vmatpush.msra.mxu0 0.0
    %595 = vmatpush.msra.mxu0 0.0
    %596 = vmatpush.msra.mxu0 %v575
    %597 = vmatpush.msra.mxu0 %v574
    %598 = vmatpush.msra.mxu0 %v573
    %599 = vmatpush.msra.mxu0 %v572
    %600 = vmatmul.f32.gmra.mxu0 %v579
    %v601 = vpop.f32.mrf.mxu0
    %v602 = vadd.f32 %v577, %v601
    %603 = vmatmul.f32.gmra.mxu0 %v582
    %v604 = vpop.f32.mrf.mxu0
    %v605 = vadd.f32 %v577, %v604
    %606 = vdwg.mxu0
    %v607 = vtanh.pop %v602
    %v608 = vtanh.pop %v605
    %v609 = vld [vmem:[#allocation5 + $0x1a0] sm:$0xff]
    %v610 = vld [vmem:[#allocation5 + $0x1a8] sm:$0xff]
    %v611 = vld [vmem:[#allocation5 + $0x1b0] sm:$0xff]
    %v612 = vld [vmem:[#allocation5 + $0x1b8] sm:$0xff]
    %v613 = vld [vmem:[#allocation5 + $0x1cd] sm:$0x1]
    %v614 = vperm.slane %v613, 0
    %v616 = vsel %vm98, %v607, 0
    %v619 = vsel %vm98, %v608, 0
    %621 = vmatpush.msra.mxu0 0.0
    %622 = vmatpush.msra.mxu0 0.0
    %623 = vmatpush.msra.mxu0 0.0
    %624 = vmatpush.msra.mxu0 0.0
    %625 = vmatpush.msra.mxu0 0.0
    %626 = vmatpush.msra.mxu0 0.0
    %627 = vmatpush.msra.mxu0 0.0
    %628 = vmatpush.msra.mxu0 0.0
    %629 = vmatpush.msra.mxu0 0.0
    %630 = vmatpush.msra.mxu0 0.0
    %631 = vmatpush.msra.mxu0 0.0
    %632 = vmatpush.msra.mxu0 0.0
    %633 = vmatpush.msra.mxu0 %v612
    %634 = vmatpush.msra.mxu0 %v611
    %635 = vmatpush.msra.mxu0 %v610
    %636 = vmatpush.msra.mxu0 %v609
    %637 = vmatmul.f32.gmra.mxu0 %v616
    %v638 = vpop.f32.mrf.mxu0
    %v639 = vadd.f32 %v614, %v638
    %640 = vmatmul.f32.gmra.mxu0 %v619
    %v641 = vpop.f32.mrf.mxu0
    %v642 = vadd.f32 %v614, %v641
    %643 = vdwg.mxu0
    %v644 = vsub.f32 %v639, 1.0
    %v645 = vsub.f32 %v642, 1.0
    %v646 = vmul.f32 %v644, 100.0
    %v647 = vmul.f32 %v645, 100.0
    %v648 = vsub.f32 %v646, %v56
    %v649 = vsub.f32 %v647, %v57
    %v650 = vmul.f32 %v648, %v648
    %v651 = vmul.f32 %v649, %v649
    %vm652 = vcmask 80896
    %v653 = vsel %vm652, %v650, 0.0
    %654 = vadd.xlane.f32.xlu0 %v653
    %v655 = vpop.xlane.xlu0 %654
    %v656 = vrot.slane %v655, 4
    %v657 = vadd.f32 %v655, %v656
    %v658 = vrot.slane %v657, 2
    %v659 = vadd.f32 %v657, %v658
    %v660 = vrot.slane %v659, 1
    %v661 = vadd.f32 %v659, %v660
    %s662 = vtos %v661
    %v663 = vrcp.pop 20.0
    %v664 = vmul.f32 20.0, %v663
    %v665 = vsub.f32 1.0, %v664
    %v666 = vmul.f32 %v663, %v665
    %v667 = vadd.f32 %v663, %v666
    %vm668 = vweird.f32 %v663
    %v669 = vsel %vm668, %v663, %v667
    %s670 = vtos %v669
    %s671 = smul.f32 %s662, %s670
    %v672 = vsel %vm652, %v651, 0.0
    %673 = vadd.xlane.f32.xlu0 %v672
    %v674 = vpop.xlane.xlu0 %673
    %v675 = vrot.slane %v674, 4
    %v676 = vadd.f32 %v674, %v675
    %v677 = vrot.slane %v676, 2
    %v678 = vadd.f32 %v676, %v677
    %v679 = vrot.slane %v678, 1
    %v680 = vadd.f32 %v678, %v679
    %s681 = vtos %v680
    %v682 = vrcp.pop 20.0
    %v683 = vmul.f32 20.0, %v682
    %v684 = vsub.f32 1.0, %v683
    %v685 = vmul.f32 %v682, %v684
    %v686 = vadd.f32 %v682, %v685
    %vm687 = vweird.f32 %v682
    %v688 = vsel %vm687, %v682, %v686
    %s689 = vtos %v688
    %s690 = smul.f32 %s681, %s689
    %v691 = vadd.f32 %v489, 1.0
    %v692 = vadd.f32 %v338, 1.0
    %v693 = vmul.f32 %v463, %v463
    %v694 = vmul.f32 %v312, %v312
    %v695 = vsub.f32 %v691, %v693
    %v696 = vsub.f32 %v692, %v694
    %v697 = vmul.f32 %v489, 1.442695
    %v698 = vpow.pop %v697
    %v699 = vmul.f32 %v338, 1.442695
    %v700 = vpow.pop %v699
    %v701 = vsub.f32 %v695, %v698
    %v702 = vsub.f32 %v696, %v700
    %v703 = vsel %vm156, %v701, 0.0
    %vm704 = vcmask 58368
    %v705 = vsel %vm704, %v702, 0.0
    %v706 = vadd.f32 %v703, %v705
    %707 = vadd.xlane.f32.xlu0 %v706
    %v708 = vpop.xlane.xlu0 %707
    %v709 = vrot.slane %v708, 4
    %v710 = vadd.f32 %v708, %v709
    %v711 = vrot.slane %v710, 2
    %v712 = vadd.f32 %v710, %v711
    %v713 = vrot.slane %v712, 1
    %v714 = vadd.f32 %v712, %v713
    %s715 = vtos %v714
    %s716 = smul.f32 %s715, -0.5
    %v717 = vrcp.pop 16.0
    %v718 = vmul.f32 16.0, %v717
    %v719 = vsub.f32 1.0, %v718
    %v720 = vmul.f32 %v717, %v719
    %v721 = vadd.f32 %v717, %v720
    %vm722 = vweird.f32 %v717
    %v723 = vsel %vm722, %v717, %v721
    %s724 = vtos %v723
    %s725 = smul.f32 %s716, %s724
    %s726 = sadd.f32 %s671, %s690
    %s727 = smul.f32 %s725, 0.5
    %s728 = sadd.f32 %s726, %s727
    %s729 = scalar_lea.smem [#allocation7], 0
    %730 = sst [smem:[%s729]] %s728
    %s731 = scalar_lea.smem [#allocation7], 1
    %732 = sst [smem:[%s731]] %s671
    %s733 = scalar_lea.smem [#allocation7], 2
    %734 = sst [smem:[%s733]] %s690
    %s735 = scalar_lea.smem [#allocation7], 3
    %736 = sst [smem:[%s735]] %s725
    // Predicated region
    $region30: #{tpu_custom_call.1} parent=1 // pred_check
      _
    $region31: #{tpu_custom_call.1} parent=1 // pred_check_branch
      %738 = sbr.rel (0) target = $region33
    $region32: #{tpu_custom_call.1} parent=1 // pred_region
      %740 = vsyncadd [#allocation4], 0
      %s742 = sshll.u32 %s5, 4
      %s743 = int_to_ptr.hbm [resolvable:$true] %s742
      %745 = dma.smem_to_hbm [#allocation7], 16, %s743, [#allocation4]
    $region33: #{tpu_custom_call.1} parent=1 // pred_fallthru
      _
    // Predicated region
    $region34: #{tpu_custom_call.1} parent=1 // pred_check
      _
    $region35: #{tpu_custom_call.1} parent=1 // pred_check_branch
      %747 = sbr.rel (0) target = $region37
    $region36: #{tpu_custom_call.1} parent=1 // pred_region
      %749 = dma.done [#allocation4], 16
    $region37: #{tpu_custom_call.1} parent=1 // pred_fallthru
      _
    %750 = sfence
    %751 = vsyncpa [#allocation3], 1
    %752 = vsyncpa [#allocation6], 1
    %753 = vsyncpa [#allocation4], 1

</llo_original>
